<compile_context>
chip_gen: v7x
topology: tpu7x:2x2x1
jax: 0.10.0
libtpu: 0.0.40
codegen_flags: <defaults>
</compile_context>

<pallas_src>
import functools

import jax
import jax.numpy as jnp
from jax import lax
from jax.experimental import pallas as pl
from jax.experimental.pallas import tpu as pltpu

LANES = 128
SUBLANES = 8
# -log(1e-7): clamping softplus at this value == clamping pt below at 1e-7.
_NEG_LOG_CLAMP = 16.11809565095832


def _chunk_loss_sum(pred_ref, true_ref, r0, nrows, elem_base, total, q, masked):
    """Loss for rows [r0, r0+nrows) of the current tile, reduced to an (8,128) vreg."""
    x = pred_ref[pl.ds(r0, nrows), :].astype(jnp.float32)
    y = true_ref[pl.ds(r0, nrows), :].astype(jnp.float32)

    # Hard binary labels:  pt = sigmoid((2y-1)*x),  pt^q = exp(-q*softplus(-z)),
    # softplus clamped at -log(1e-7) to emulate the reference clamp(p, 1e-7, 1).
    z = (2.0 * y - 1.0) * x
    sp = jnp.minimum(jnp.log1p(jnp.exp(-z)), _NEG_LOG_CLAMP)   # 2 EUP ops
    ptq = jnp.exp((-q) * sp)                                    # 1 EUP op
    loss = (1.0 - ptq) * (1.0 / q)

    if masked:
        # Global element index -> zero out padded / ragged / phantom elements.
        # NOTE: applied after the transcendental chain; select blocks NaN/Inf
        # propagation from garbage VMEM in partially out-of-bounds blocks.
        rid = lax.broadcasted_iota(jnp.int32, (nrows, LANES), 0)
        lid = lax.broadcasted_iota(jnp.int32, (nrows, LANES), 1)
        idx = elem_base + rid * LANES + lid
        loss = jnp.where(idx < total, loss, 0.0)

    # Sublane-band reduction: plain VPU adds of (8,128) vregs (no XLU).
    return loss.reshape(nrows // SUBLANES, SUBLANES, LANES).sum(axis=0)


def _tile_loss_sum(pred_ref, true_ref, base, *, q, total, tile_rows, chunk_rows, masked):
    """Sum of the loss over one (tile_rows,128) tile as an (8,128) accumulator."""
    n_full = tile_rows // chunk_rows
    rem = tile_rows - n_full * chunk_rows          # static, multiple of 8
    chunk_elems = chunk_rows * LANES

    acc = jnp.zeros((SUBLANES, LANES), jnp.float32)

    if n_full > 0:
        def body(c, a):
            r0 = pl.multiple_of(c * chunk_rows, chunk_rows)
            return a + _chunk_loss_sum(pred_ref, true_ref, r0, chunk_rows,
                                       base + c * chunk_elems, total, q, masked)
        acc = lax.fori_loop(0, n_full, body, acc, unroll=min(4, n_full))

    if rem > 0:
        r0 = n_full * chunk_rows
        acc = acc + _chunk_loss_sum(pred_ref, true_ref, r0, rem,
                                    base + r0 * LANES, total, q, masked)
    return acc


def _gce_kernel(pred_ref, true_ref, out_ref, *, q, total, tile_rows,
                tiles_per_split, chunk_rows):
    i = pl.program_id(0)   # "parallel" split (megacore shard on v7x)
    j = pl.program_id(1)   # "arbitrary" reduction axis over row tiles

    # Output block index is (i, 0) for every j -> block stays resident in VMEM and
    # acts as this split's accumulator.  Init once per split.
    @pl.when(j == 0)
    def _():
        out_ref[...] = jnp.zeros_like(out_ref)

    tile_elems = tile_rows * LANES
    base = (i * tiles_per_split + j) * tile_elems   # logical (unclamped) element base

    # Fast path: tile entirely inside the valid range -> no mask work at all.
    @pl.when(base + tile_elems <= total)
    def _():
        out_ref[...] += _tile_loss_sum(pred_ref, true_ref, base, q=q, total=total,
                                       tile_rows=tile_rows, chunk_rows=chunk_rows,
                                       masked=False)

    # Tail path: ragged last block / padded tail / phantom tile -> iota masking.
    @pl.when(base + tile_elems > total)
    def _():
        out_ref[...] += _tile_loss_sum(pred_ref, true_ref, base, q=q, total=total,
                                       tile_rows=tile_rows, chunk_rows=chunk_rows,
                                       masked=True)


def gce_ref(y_pred, y_true, q):
    """Exact plain-XLA reference matching the PyTorch module semantics."""
    p = jnp.clip(jax.nn.sigmoid(y_pred.astype(jnp.float32)), 1e-07, 1.0)
    y = y_true.astype(jnp.float32)
    pt = jnp.abs(y * p + (1.0 - y) * (1.0 - p))
    return jnp.mean((1.0 - jnp.power(pt, q)) / q)


def gce_loss(y_pred, y_true, q, *, tile_rows=4096, xla_fallback_min_elements=1 << 20):
    """GCE loss (scalar f32). y_pred: logits, y_true: binary labels, same shape.

    Inputs may be f32 / bf16 logits and f32 / bf16 / int8 labels; the upcast to f32
    happens in-kernel, so narrow dtypes directly reduce HBM traffic.
    """
    assert y_pred.shape == y_true.shape
    total = int(y_pred.size)

    # Tiny tensors: fixed pallas_call launch + per-step overhead dominates -> use XLA.
    if total < xla_fallback_min_elements:
        return gce_ref(y_pred, y_true, q)

    # Flatten in the original dtype (no wrapper-side astype pass).
    flat_pred = y_pred.reshape(-1)
    flat_true = y_true.reshape(-1)

    # Minimal padding to a multiple of 8*128 so the data views as a lane-dense
    # (rows, 128) slab with rows % 8 == 0.  Padded elements are masked in-kernel;
    # the pad copy only happens for non-aligned sizes.
    min_block = SUBLANES * LANES
    padded = pl.cdiv(total, min_block) * min_block
    pad = padded - total
    if pad:
        flat_pred = jnp.pad(flat_pred, (0, pad))
        flat_true = jnp.pad(flat_true, (0, pad))

    rows = padded // LANES                      # multiple of 8
    pred2d = flat_pred.reshape(rows, LANES)
    true2d = flat_true.reshape(rows, LANES)

    # Large row tiles; 4096 rows = 2 MiB f32 per stream -> 8 MiB double-buffered,
    # safe on v5e's 16 MiB default scoped VMEM (don't raise past this on v5e).
    tile_rows = int(min(tile_rows, rows))
    tile_rows = max(SUBLANES, (tile_rows // SUBLANES) * SUBLANES)
    n_tiles = pl.cdiv(rows, tile_rows)

    # Always 2-way "parallel" split when possible so v7x uses both TensorCores even
    # for odd tile counts (phantom tiles are clamped reads, fully masked in-kernel).
    n_splits = 2 if n_tiles >= 2 else 1
    tiles_per_split = pl.cdiv(n_tiles, n_splits)
    has_phantom = n_splits * tiles_per_split > n_tiles

    # In-kernel chunk size (bounds vreg live ranges); multiple of 8, divides tile
    # handling via full-chunks + static remainder.
    chunk_rows = min(128, tile_rows)

    kernel = functools.partial(
        _gce_kernel,
        q=float(q),
        total=total,
        tile_rows=tile_rows,
        tiles_per_split=tiles_per_split,
        chunk_rows=chunk_rows,
    )

    def in_map(i, j):
        t = i * tiles_per_split + j
        if has_phantom:
            t = jnp.minimum(t, n_tiles - 1)   # keep phantom-tile DMA in bounds
        return (t, 0)

    partial_sums = pl.pallas_call(
        kernel,
        out_shape=jax.ShapeDtypeStruct((SUBLANES * n_splits, LANES), jnp.float32),
        grid_spec=pltpu.PrefetchScalarGridSpec(
            num_scalar_prefetch=0,
            grid=(n_splits, tiles_per_split),
            in_specs=[
                pl.BlockSpec((tile_rows, LANES), in_map),
                pl.BlockSpec((tile_rows, LANES), in_map),
            ],
            out_specs=pl.BlockSpec((SUBLANES, LANES), lambda i, j: (i, 0)),
        ),
        compiler_params=pltpu.CompilerParams(
            dimension_semantics=("parallel", "arbitrary"),
        ),
    )(pred2d, true2d)

    # Single cheap cross-lane/sublane reduce + mean scale outside the hot loop.
    return jnp.sum(partial_sums) / jnp.float32(total)


if __name__ == "__main__":
    q = 0.7
    key = jax.random.PRNGKey(0)
    k1, k2, k3, k4 = jax.random.split(key, 4)

    # Small NCHW demo consistent with the module (batch=2, channels=4, 16x16).
    # Force the Pallas path (the default wrapper would take the XLA fallback here).
    y_pred = jax.random.normal(k1, (2, 4, 16, 16), dtype=jnp.float32)
    y_true = (jax.random.uniform(k2, (2, 4, 16, 16)) > 0.5).astype(jnp.float32)
    loss = jax.block_until_ready(gce_loss(y_pred, y_true, q, xla_fallback_min_elements=0))
    ref = jax.block_until_ready(gce_ref(y_pred, y_true, q))
    assert jnp.allclose(loss, ref, rtol=1e-4, atol=1e-6), (loss, ref)

    # Larger check exercising multi-tile streaming, the always-on 2-way parallel
    # split with a phantom tile (3 tiles -> grid (2,2)), the ragged last block, and
    # narrow input dtypes (bf16 logits + int8 labels).
    shape2 = (2, 4, 384, 384)   # 1,179,648 elements -> rows=9216 -> 3 tiles of 4096
    y_pred2 = jax.random.normal(k3, shape2, dtype=jnp.float32).astype(jnp.bfloat16)
    y_true2 = (jax.random.uniform(k4, shape2) > 0.5).astype(jnp.int8)
    loss2 = jax.block_until_ready(gce_loss(y_pred2, y_true2, q))
    ref2 = jax.block_until_ready(
        gce_ref(y_pred2.astype(jnp.float32), y_true2.astype(jnp.float32), q))
    assert jnp.allclose(loss2, ref2, rtol=1e-4, atol=1e-5), (loss2, ref2)

    print("KERNEL_OK")
</pallas_src>

<mosaic_0001>
module attributes {stable_mosaic.version = 11 : i64} {
  func.func @_gce_kernel(%arg0: i32, %arg1: i32, %arg2: memref<16x128xf32, #tpu.memory_space<vmem>>, %arg3: memref<16x128xf32, #tpu.memory_space<vmem>>, %arg4: memref<8x128xf32, #tpu.memory_space<vmem>>) attributes {dimension_semantics = [#tpu.dimension_semantics<parallel>, #tpu.dimension_semantics<arbitrary>], iteration_bounds = array<i64: 1, 1>, scalar_prefetch = 0 : i64, scratch_operands = 0 : i64, tpu.core_type = #tpu.core_type<tc>, window_params = [{transform_indices = @transform_0, window_bounds = array<i64: 16, 128>}, {transform_indices = @transform_1, window_bounds = array<i64: 16, 128>}, {transform_indices = @transform_2, window_bounds = array<i64: 8, 128>}]} {
    %c0_i32 = arith.constant 0 : i32
    %0 = arith.cmpi eq, %arg1, %c0_i32 : i32
    %1 = arith.extui %0 : i1 to i32
    %c0_i32_0 = arith.constant 0 : i32
    %2 = arith.cmpi ne, %1, %c0_i32_0 : i32
    scf.if %2 {
      %cst = arith.constant 0.000000e+00 : f32
      %14 = vector.broadcast %cst : f32 to vector<8x128xf32>
      %c0 = arith.constant 0 : index
      %c0_7 = arith.constant 0 : index
      %15 = vector.load %arg4[%c0, %c0_7] : memref<8x128xf32, #tpu.memory_space<vmem>>, vector<8x128xf32>
      tpu.vector_store %arg4[%c0, %c0_7], %14 {strides = array<i32>} : memref<8x128xf32, #tpu.memory_space<vmem>>, vector<8x128xf32>,
    } else {
    }
    %c1_i32 = arith.constant 1 : i32
    %3 = arith.muli %arg0, %c1_i32 : i32
    %4 = arith.addi %3, %arg1 : i32
    %c2048_i32 = arith.constant 2048 : i32
    %5 = arith.muli %4, %c2048_i32 : i32
    %c2048_i32_1 = arith.constant 2048 : i32
    %6 = arith.addi %5, %c2048_i32_1 : i32
    %c2048_i32_2 = arith.constant 2048 : i32
    %7 = arith.cmpi sle, %6, %c2048_i32_2 : i32
    %8 = arith.extui %7 : i1 to i32
    %c0_i32_3 = arith.constant 0 : i32
    %9 = arith.cmpi ne, %8, %c0_i32_3 : i32
    scf.if %9 {
      %c0 = arith.constant 0 : index
      %c0_7 = arith.constant 0 : index
      %14 = vector.load %arg4[%c0, %c0_7] : memref<8x128xf32, #tpu.memory_space<vmem>>, vector<8x128xf32>
      %cst = arith.constant 0.000000e+00 : f32
      %15 = vector.broadcast %cst : f32 to vector<8x128xf32>
      %c0_i32_8 = arith.constant 0 : i32
      %c16_i32 = arith.constant 16 : i32
      %16 = arith.muli %c0_i32_8, %c16_i32 : i32
      %17 = tpu.assume_multiple %16, 16 : i32
      %18 = arith.index_cast %17 : i32 to index
      %c0_9 = arith.constant 0 : index
      %19 = vector.load %arg2[%18, %c0_9] : memref<16x128xf32, #tpu.memory_space<vmem>>, vector<16x128xf32>
      %20 = arith.index_cast %17 : i32 to index
      %c0_10 = arith.constant 0 : index
      %21 = vector.load %arg3[%20, %c0_10] : memref<16x128xf32, #tpu.memory_space<vmem>>, vector<16x128xf32>
      %cst_11 = arith.constant 2.000000e+00 : f32
      %22 = vector.broadcast %cst_11 : f32 to vector<16x128xf32>
      %23 = arith.mulf %22, %21 : vector<16x128xf32>
      %cst_12 = arith.constant 1.000000e+00 : f32
      %24 = vector.broadcast %cst_12 : f32 to vector<16x128xf32>
      %25 = arith.subf %23, %24 : vector<16x128xf32>
      %26 = arith.mulf %25, %19 : vector<16x128xf32>
      %cst_13 = arith.constant 0.000000e+00 : f32
      %27 = vector.broadcast %cst_13 : f32 to vector<16x128xf32>
      %28 = arith.subf %27, %26 : vector<16x128xf32>
      %29 = math.exp %28 : vector<16x128xf32>
      %30 = math.log1p %29 : vector<16x128xf32>
      %cst_14 = arith.constant 16.1180954 : f32
      %31 = vector.broadcast %cst_14 : f32 to vector<16x128xf32>
      %32 = arith.minimumf %30, %31 : vector<16x128xf32>
      %cst_15 = arith.constant -0.699999988 : f32
      %33 = vector.broadcast %cst_15 : f32 to vector<16x128xf32>
      %34 = arith.mulf %33, %32 : vector<16x128xf32>
      %35 = math.exp %34 : vector<16x128xf32>
      %cst_16 = arith.constant 1.000000e+00 : f32
      %36 = vector.broadcast %cst_16 : f32 to vector<16x128xf32>
      %37 = arith.subf %36, %35 : vector<16x128xf32>
      %cst_17 = arith.constant 1.42857146 : f32
      %38 = vector.broadcast %cst_17 : f32 to vector<16x128xf32>
      %39 = arith.mulf %37, %38 : vector<16x128xf32>
      %40 = vector.shape_cast %39 : vector<16x128xf32> to vector<2x8x128xf32>
      %cst_18 = arith.constant dense<0.000000e+00> : vector<8x128xf32>
      %41 = vector.multi_reduction <add>, %40, %cst_18 [0] : vector<2x8x128xf32> to vector<8x128xf32>
      %42 = arith.addf %15, %41 : vector<8x128xf32>
      %c1_i32_19 = arith.constant 1 : i32
      %43 = arith.addf %14, %42 : vector<8x128xf32>
      %c0_20 = arith.constant 0 : index
      %c0_21 = arith.constant 0 : index
      %44 = vector.load %arg4[%c0_20, %c0_21] : memref<8x128xf32, #tpu.memory_space<vmem>>, vector<8x128xf32>
      tpu.vector_store %arg4[%c0_20, %c0_21], %43 {strides = array<i32>} : memref<8x128xf32, #tpu.memory_space<vmem>>, vector<8x128xf32>,
    } else {
    }
    %c2048_i32_4 = arith.constant 2048 : i32
    %10 = arith.addi %5, %c2048_i32_4 : i32
    %c2048_i32_5 = arith.constant 2048 : i32
    %11 = arith.cmpi sgt, %10, %c2048_i32_5 : i32
    %12 = arith.extui %11 : i1 to i32
    %c0_i32_6 = arith.constant 0 : i32
    %13 = arith.cmpi ne, %12, %c0_i32_6 : i32
    scf.if %13 {
      %c0 = arith.constant 0 : index
      %c0_7 = arith.constant 0 : index
      %14 = vector.load %arg4[%c0, %c0_7] : memref<8x128xf32, #tpu.memory_space<vmem>>, vector<8x128xf32>
      %cst = arith.constant 0.000000e+00 : f32
      %15 = vector.broadcast %cst : f32 to vector<8x128xf32>
      %c0_i32_8 = arith.constant 0 : i32
      %c16_i32 = arith.constant 16 : i32
      %16 = arith.muli %c0_i32_8, %c16_i32 : i32
      %17 = tpu.assume_multiple %16, 16 : i32
      %c2048_i32_9 = arith.constant 2048 : i32
      %18 = arith.muli %c0_i32_8, %c2048_i32_9 : i32
      %19 = arith.addi %5, %18 : i32
      %20 = arith.index_cast %17 : i32 to index
      %c0_10 = arith.constant 0 : index
      %21 = vector.load %arg2[%20, %c0_10] : memref<16x128xf32, #tpu.memory_space<vmem>>, vector<16x128xf32>
      %22 = arith.index_cast %17 : i32 to index
      %c0_11 = arith.constant 0 : index
      %23 = vector.load %arg3[%22, %c0_11] : memref<16x128xf32, #tpu.memory_space<vmem>>, vector<16x128xf32>
      %cst_12 = arith.constant 2.000000e+00 : f32
      %24 = vector.broadcast %cst_12 : f32 to vector<16x128xf32>
      %25 = arith.mulf %24, %23 : vector<16x128xf32>
      %cst_13 = arith.constant 1.000000e+00 : f32
      %26 = vector.broadcast %cst_13 : f32 to vector<16x128xf32>
      %27 = arith.subf %25, %26 : vector<16x128xf32>
      %28 = arith.mulf %27, %21 : vector<16x128xf32>
      %cst_14 = arith.constant 0.000000e+00 : f32
      %29 = vector.broadcast %cst_14 : f32 to vector<16x128xf32>
      %30 = arith.subf %29, %28 : vector<16x128xf32>
      %31 = math.exp %30 : vector<16x128xf32>
      %32 = math.log1p %31 : vector<16x128xf32>
      %cst_15 = arith.constant 16.1180954 : f32
      %33 = vector.broadcast %cst_15 : f32 to vector<16x128xf32>
      %34 = arith.minimumf %32, %33 : vector<16x128xf32>
      %cst_16 = arith.constant -0.699999988 : f32
      %35 = vector.broadcast %cst_16 : f32 to vector<16x128xf32>
      %36 = arith.mulf %35, %34 : vector<16x128xf32>
      %37 = math.exp %36 : vector<16x128xf32>
      %cst_17 = arith.constant 1.000000e+00 : f32
      %38 = vector.broadcast %cst_17 : f32 to vector<16x128xf32>
      %39 = arith.subf %38, %37 : vector<16x128xf32>
      %cst_18 = arith.constant 1.42857146 : f32
      %40 = vector.broadcast %cst_18 : f32 to vector<16x128xf32>
      %41 = arith.mulf %39, %40 : vector<16x128xf32>
      %42 = tpu.iota {dimensions = array<i32: 0>} : vector<16x128xi32>
      %43 = tpu.iota {dimensions = array<i32: 1>} : vector<16x128xi32>
      %c128_i32 = arith.constant 128 : i32
      %44 = vector.broadcast %c128_i32 : i32 to vector<16x128xi32>
      %45 = arith.muli %42, %44 : vector<16x128xi32>
      %46 = vector.broadcast %19 : i32 to vector<16x128xi32>
      %47 = arith.addi %46, %45 : vector<16x128xi32>
      %48 = arith.addi %47, %43 : vector<16x128xi32>
      %c2048_i32_19 = arith.constant 2048 : i32
      %49 = vector.broadcast %c2048_i32_19 : i32 to vector<16x128xi32>
      %50 = arith.cmpi slt, %48, %49 : vector<16x128xi32>
      %cst_20 = arith.constant 0.000000e+00 : f32
      %51 = vector.broadcast %cst_20 : f32 to vector<16x128xf32>
      %52 = arith.select %50, %41, %51 : vector<16x128xi1>, vector<16x128xf32>
      %53 = vector.shape_cast %52 : vector<16x128xf32> to vector<2x8x128xf32>
      %cst_21 = arith.constant dense<0.000000e+00> : vector<8x128xf32>
      %54 = vector.multi_reduction <add>, %53, %cst_21 [0] : vector<2x8x128xf32> to vector<8x128xf32>
      %55 = arith.addf %15, %54 : vector<8x128xf32>
      %c1_i32_22 = arith.constant 1 : i32
      %56 = arith.addf %14, %55 : vector<8x128xf32>
      %c0_23 = arith.constant 0 : index
      %c0_24 = arith.constant 0 : index
      %57 = vector.load %arg4[%c0_23, %c0_24] : memref<8x128xf32, #tpu.memory_space<vmem>>, vector<8x128xf32>
      tpu.vector_store %arg4[%c0_23, %c0_24], %56 {strides = array<i32>} : memref<8x128xf32, #tpu.memory_space<vmem>>, vector<8x128xf32>,
    } else {
    }
    return
  }
  func.func @transform_0(%arg0: i32, %arg1: i32) -> (i32, i32) {
    %c1_i32 = arith.constant 1 : i32
    %0 = arith.muli %arg0, %c1_i32 : i32
    %1 = arith.addi %0, %arg1 : i32
    %c0_i32 = arith.constant 0 : i32
    %c0_i32_0 = arith.constant 0 : i32
    return %1, %c0_i32 : i32, i32
  }
  func.func @transform_1(%arg0: i32, %arg1: i32) -> (i32, i32) {
    %c1_i32 = arith.constant 1 : i32
    %0 = arith.muli %arg0, %c1_i32 : i32
    %1 = arith.addi %0, %arg1 : i32
    %c0_i32 = arith.constant 0 : i32
    %c0_i32_0 = arith.constant 0 : i32
    return %1, %c0_i32 : i32, i32
  }
  func.func @transform_2(%arg0: i32, %arg1: i32) -> (i32, i32) {
    %c0_i32 = arith.constant 0 : i32
    %c0_i32_0 = arith.constant 0 : i32
    return %arg0, %c0_i32 : i32, i32
  }
}

</mosaic_0001>

<llo_original>
// kernel: tpu_custom_call.1
$region0: #{tpu_custom_call.1}
  #allocation0 [shape = 'u32[]', space=smem, size = 0x4, offset = 0x4, fixed_abs, tag = 'smem constant byte address 0x4 - core index']
  #allocation1 [shape = 'u32[144,128]{1,0:T(1,128)}', space=vmem, size = 0x12000, scoped, tag = 'internal scratch']
  %s0 = inlined_call_operand.hbm [shape: f32[16,128], index: 0, kind: input, shape index: {}]
  %s1 = inlined_call_operand.hbm [shape: f32[16,128], index: 1, kind: input, shape index: {}]
  %s2 = inlined_call_operand.hbm [shape: f32[8,128], index: 2, kind: output, shape index: {}]
  %s3 = sld [smem:[#allocation0]]
  $region38: #{tpu_custom_call.1} parent=0
    _
  %s5 = ssub.s32 1, %s3
  %s6 = scalar_select 0, %s5, %s3
  $region1: #{tpu_custom_call.1} parent=0
    #allocation2 [shape = 'u8[8192]{0}', space=vmem, size = 0x2000, scoped, tag = 'input window, operand 0, single buffered']
    #allocation3 [shape = 's32[1]{0}', space=sflag, size = 0x4, scoped, tag = 'scoped memory for tpu_custom_call.1']
    #allocation4 [shape = 's32[1]{0}', space=sflag, size = 0x4, scoped, tag = 'scoped memory for tpu_custom_call.1']
    #allocation5 [shape = 'u8[8192]{0}', space=vmem, size = 0x2000, scoped, tag = 'input window, operand 1, single buffered']
    #allocation6 [shape = 's32[1]{0}', space=sflag, size = 0x4, scoped, tag = 'scoped memory for tpu_custom_call.1']
    #allocation7 [shape = 'u8[4096]{0}', space=vmem, size = 0x1000, scoped, tag = 'output window, operand 0, single buffered']
    %7 = vsyncpa [#allocation3], 0
    %8 = vsyncpa [#allocation6], 0
    %9 = vsyncpa [#allocation4], 0
    // Predicated region
    $region2: #{tpu_custom_call.1} parent=1 // pred_check
      _
    $region3: #{tpu_custom_call.1} parent=1 // pred_check_branch
      %11 = sbr.rel (0) target = $region5
    $region4: #{tpu_custom_call.1} parent=1 // pred_region
      %s12 = sadd.s32 0, 0
      %s13 = smul.u32 2, %s12
      %s15 = ssub.s32 256, 256
      %16 = vsyncadd [#allocation3], %s15
      %s17 = smul.addr %s13, 128
      %s18 = scalar_lea.hbm %s0, %s17
      %s19 = sshll.u32 [#allocation2], 4
      %s20 = int_to_ptr.vmem [resolvable:$true] %s19
      %25 = dma.hbm_to_vmem [thread:$0]  %s18, 256, %s20, [#allocation3], 128, 128, 8
    $region5: #{tpu_custom_call.1} parent=1 // pred_fallthru
      _
    // Predicated region
    $region6: #{tpu_custom_call.1} parent=1 // pred_check
      _
    $region7: #{tpu_custom_call.1} parent=1 // pred_check_branch
      %27 = sbr.rel (0) target = $region9
    $region8: #{tpu_custom_call.1} parent=1 // pred_region
      %s28 = sadd.s32 0, 0
      %s29 = smul.u32 2, %s28
      %s31 = ssub.s32 256, 256
      %32 = vsyncadd [#allocation6], %s31
      %s33 = smul.addr %s29, 128
      %s34 = scalar_lea.hbm %s1, %s33
      %s35 = sshll.u32 [#allocation5], 4
      %s36 = int_to_ptr.vmem [resolvable:$true] %s35
      %41 = dma.hbm_to_vmem [thread:$0]  %s34, 256, %s36, [#allocation6], 128, 128, 8
    $region9: #{tpu_custom_call.1} parent=1 // pred_fallthru
      _
    // Predicated region
    $region10: #{tpu_custom_call.1} parent=1 // pred_check
      _
    $region11: #{tpu_custom_call.1} parent=1 // pred_check_branch
      %43 = sbr.rel (0) target = $region13
    $region12: #{tpu_custom_call.1} parent=1 // pred_region
      %44 = dma.done [#allocation3], 256
    $region13: #{tpu_custom_call.1} parent=1 // pred_fallthru
      _
    // Predicated region
    $region14: #{tpu_custom_call.1} parent=1 // pred_check
      _
    $region15: #{tpu_custom_call.1} parent=1 // pred_check_branch
      %46 = sbr.rel (0) target = $region17
    $region16: #{tpu_custom_call.1} parent=1 // pred_region
      %47 = dma.done [#allocation6], 256
    $region17: #{tpu_custom_call.1} parent=1 // pred_fallthru
      _
    %s48 = sadd.s32 0, 0
    %s49 = smul.u32 2, %s48
    %s50 = sadd.s32 0, 0
    %s51 = smul.u32 2, %s50
    %p52 = scmp.eq.s32.totalorder 0, 0
    // Predicated region
    $region18: #{tpu_custom_call.1} parent=1 // pred_check
      %p53 = pneg %p52
    $region19: #{tpu_custom_call.1} parent=1 // pred_check_branch
      %55 = sbr.rel (%p53) target = $region21
    $region20: #{tpu_custom_call.1} parent=1 // pred_region
      %56 = vst [vmem:[#allocation7] sm:$0xff] 0.0
    $region21: #{tpu_custom_call.1} parent=1 // pred_fallthru
      _
    %s57 = sadd.s32 0, 0
    %s58 = smul.u32 %s57, 2048
    %s59 = sadd.s32 %s58, 2048
    %p60 = scmp.le.s32.totalorder %s59, 2048
    // Predicated region
    $region22: #{tpu_custom_call.1} parent=1 // pred_check
      %p61 = pneg %p60
    $region23: #{tpu_custom_call.1} parent=1 // pred_check_branch
      %63 = sbr.rel (%p61) target = $region25
    $region24: #{tpu_custom_call.1} parent=1 // pred_region
      %v64 = vld [vmem:[#allocation7] sm:$0xff]
      %v65 = vld [vmem:[#allocation2] sm:$0xff]
      %v66 = vld [vmem:[#allocation2 + $0x8] sm:$0xff]
      %v67 = vld [vmem:[#allocation5] sm:$0xff]
      %v68 = vld [vmem:[#allocation5 + $0x8] sm:$0xff]
      %v69 = vmul.f32 %v67, 2.0
      %v70 = vmul.f32 %v68, 2.0
      %v71 = vsub.f32 %v69, 1.0
      %v72 = vsub.f32 %v70, 1.0
      %v73 = vmul.f32 %v71, %v65
      %v74 = vmul.f32 %v72, %v66
      %v75 = vsub.f32 0.0, %v73
      %v76 = vsub.f32 0.0, %v74
      %v77 = vmul.f32 %v75, 1.442695
      %v78 = vpow.pop %v77
      %v79 = vmul.f32 %v76, 1.442695
      %v80 = vpow.pop %v79
      %v81 = vadd.f32 %v78, 1.0
      %v82 = vlog2.pop %v81
      %v83 = vmul.f32 %v82, 0.6931472
      %v84 = vmul.f32 -0.5, %v78
      %v85 = vadd.f32 %v84, 1.0
      %v86 = vmul.f32 %v85, %v78
      %v87 = vand.u32 2147483647, %v78
      %vm88 = vcmp.lt.f32.partialorder %v87, 0.0004427343
      %v89 = vsel %vm88, %v86, %v83
      %v90 = vadd.f32 %v80, 1.0
      %v91 = vlog2.pop %v90
      %v92 = vmul.f32 %v91, 0.6931472
      %v93 = vmul.f32 -0.5, %v80
      %v94 = vadd.f32 %v93, 1.0
      %v95 = vmul.f32 %v94, %v80
      %v96 = vand.u32 2147483647, %v80
      %vm97 = vcmp.lt.f32.partialorder %v96, 0.0004427343
      %v98 = vsel %vm97, %v95, %v92
      %v99 = vmin.f32 %v89, 16.118095
      %v100 = vmin.f32 %v98, 16.118095
      %v101 = vmul.f32 %v99, -0.7
      %v102 = vmul.f32 %v100, -0.7
      %v103 = vmul.f32 %v101, 1.442695
      %v104 = vpow.pop %v103
      %v105 = vmul.f32 %v102, 1.442695
      %v106 = vpow.pop %v105
      %v107 = vsub.f32 1.0, %v104
      %v108 = vsub.f32 1.0, %v106
      %v109 = vmul.f32 %v107, 1.4285715
      %v110 = vmul.f32 %v108, 1.4285715
      %v111 = vadd.f32 %v109, %v110
      %v112 = vadd.f32 %v111, 0.0
      %v113 = vadd.f32 %v64, %v112
      %114 = vst [vmem:[#allocation7] sm:$0xff] %v113
    $region25: #{tpu_custom_call.1} parent=1 // pred_fallthru
      _
    %p115 = scmp.gt.s32.totalorder %s59, 2048
    // Predicated region
    $region26: #{tpu_custom_call.1} parent=1 // pred_check
      %p116 = pneg %p115
    $region27: #{tpu_custom_call.1} parent=1 // pred_check_branch
      %118 = sbr.rel (%p116) target = $region29
    $region28: #{tpu_custom_call.1} parent=1 // pred_region
      %v119 = vld [vmem:[#allocation7] sm:$0xff]
      %v120 = vld [vmem:[#allocation2] sm:$0xff]
      %v121 = vld [vmem:[#allocation2 + $0x8] sm:$0xff]
      %v122 = vld [vmem:[#allocation5] sm:$0xff]
      %v123 = vld [vmem:[#allocation5 + $0x8] sm:$0xff]
      %v124 = vmul.f32 %v122, 2.0
      %v125 = vmul.f32 %v123, 2.0
      %v126 = vsub.f32 %v124, 1.0
      %v127 = vsub.f32 %v125, 1.0
      %v128 = vmul.f32 %v126, %v120
      %v129 = vmul.f32 %v127, %v121
      %v130 = vsub.f32 0.0, %v128
      %v131 = vsub.f32 0.0, %v129
      %v132 = vmul.f32 %v130, 1.442695
      %v133 = vpow.pop %v132
      %v134 = vmul.f32 %v131, 1.442695
      %v135 = vpow.pop %v134
      %v136 = vadd.f32 %v133, 1.0
      %v137 = vlog2.pop %v136
      %v138 = vmul.f32 %v137, 0.6931472
      %v139 = vmul.f32 -0.5, %v133
      %v140 = vadd.f32 %v139, 1.0
      %v141 = vmul.f32 %v140, %v133
      %v142 = vand.u32 2147483647, %v133
      %vm143 = vcmp.lt.f32.partialorder %v142, 0.0004427343
      %v144 = vsel %vm143, %v141, %v138
      %v145 = vadd.f32 %v135, 1.0
      %v146 = vlog2.pop %v145
      %v147 = vmul.f32 %v146, 0.6931472
      %v148 = vmul.f32 -0.5, %v135
      %v149 = vadd.f32 %v148, 1.0
      %v150 = vmul.f32 %v149, %v135
      %v151 = vand.u32 2147483647, %v135
      %vm152 = vcmp.lt.f32.partialorder %v151, 0.0004427343
      %v153 = vsel %vm152, %v150, %v147
      %v154 = vmin.f32 %v144, 16.118095
      %v155 = vmin.f32 %v153, 16.118095
      %v156 = vmul.f32 %v154, -0.7
      %v157 = vmul.f32 %v155, -0.7
      %v158 = vmul.f32 %v156, 1.442695
      %v159 = vpow.pop %v158
      %v160 = vmul.f32 %v157, 1.442695
      %v161 = vpow.pop %v160
      %v162 = vsub.f32 1.0, %v159
      %v163 = vsub.f32 1.0, %v161
      %v164 = vmul.f32 %v162, 1.4285715
      %v165 = vmul.f32 %v163, 1.4285715
      %v166 = vlaneseq
      %v167 = vshrl.u32 %v166, 7
      %v168 = vadd.s32 %v167, 8
      %v169 = vlaneseq
      %v170 = vand.u32 %v169, 127
      %v171 = vmul.u32 %v167, 128
      %v172 = vmul.u32 %v168, 128
      %v173 = vstv %s58
      %v174 = vadd.s32 %v173, %v171
      %v175 = vadd.s32 %v173, %v172
      %v176 = vadd.s32 %v174, %v170
      %v177 = vadd.s32 %v175, %v170
      %vm178 = vcmp.lt.s32.totalorder %v176, 2048
      %vm179 = vcmp.lt.s32.totalorder %v177, 2048
      %v180 = vsel %vm178, %v164, 0.0
      %v181 = vsel %vm179, %v165, 0.0
      %v182 = vadd.f32 %v180, %v181
      %v183 = vadd.f32 %v182, 0.0
      %v184 = vadd.f32 %v119, %v183
      %185 = vst [vmem:[#allocation7] sm:$0xff] %v184
    $region29: #{tpu_custom_call.1} parent=1 // pred_fallthru
      _
    // Predicated region
    $region30: #{tpu_custom_call.1} parent=1 // pred_check
      _
    $region31: #{tpu_custom_call.1} parent=1 // pred_check_branch
      %187 = sbr.rel (0) target = $region33
    $region32: #{tpu_custom_call.1} parent=1 // pred_region
      %s189 = ssub.s32 128, 128
      %190 = vsyncadd [#allocation4], %s189
      %s192 = sshll.u32 [#allocation7], 4
      %s193 = int_to_ptr.vmem [resolvable:$true] %s192
      %195 = dma.vmem_to_hbm [thread:$0]  %s193, 128, %s2, [#allocation4]
    $region33: #{tpu_custom_call.1} parent=1 // pred_fallthru
      _
    // Predicated region
    $region34: #{tpu_custom_call.1} parent=1 // pred_check
      _
    $region35: #{tpu_custom_call.1} parent=1 // pred_check_branch
      %197 = sbr.rel (0) target = $region37
    $region36: #{tpu_custom_call.1} parent=1 // pred_region
      %198 = dma.done [#allocation4], 128
    $region37: #{tpu_custom_call.1} parent=1 // pred_fallthru
      _
    %199 = vsyncpa [#allocation3], 1
    %200 = vsyncpa [#allocation6], 1
    %201 = vsyncpa [#allocation4], 1

</llo_original>
